<compile_context>
chip_gen: v6e
topology: v6e:2x2x1
jax: 0.10.0
libtpu: 0.0.40
codegen_flags: <defaults>
</compile_context>

<pallas_src>
import functools

import jax
import jax.numpy as jnp
from jax import lax
from jax.experimental import pallas as pl
from jax.experimental.pallas import tpu as pltpu

LANE = 128
SUB = 8


def _focal_terms(x, y, gamma, alpha, *, in_kernel):
    """Per-element focal(BCE-with-logits) loss; stable form, f32 in / f32 out.

    Exact for soft targets y in [0, 1] (no binary-label assumption).
    """
    t = jnp.exp(-jnp.abs(x))
    # BCEWithLogitsLoss(reduction='none'): max(x,0) - x*y + log(1 + exp(-|x|))
    bce = jnp.maximum(x, 0.0) - x * y + jnp.log1p(t)
    d = 1.0 + t
    if in_kernel:
        r = pl.reciprocal(d, approx=True)      # EUP slot (VALU has no slack)
        inv = r * (2.0 - d * r)                # one Newton step -> ~f32 exact
    else:
        inv = 1.0 / d
    # sigmoid(x) = where(x>=0, 1, t) / (1 + t)
    sig = jnp.where(x >= 0.0, 1.0, t) * inv
    # 1 - p_t = 1 - (y*sig + (1-y)*(1-sig)) = y + sig*(1 - 2y)
    one_m = y + sig * (1.0 - 2.0 * y)
    # alpha_factor = y*alpha + (1-y)*(1-alpha) = (1-alpha) + y*(2*alpha - 1)
    alpha_factor = (1.0 - alpha) + y * (2.0 * alpha - 1.0)
    if gamma == 1.5:
        mod = one_m * jnp.sqrt(one_m)          # avoids pow -> log+exp on EUP
    elif gamma == 2.0:
        mod = one_m * one_m
    elif gamma == 1.0:
        mod = one_m
    elif gamma == 0.0:
        mod = jnp.ones_like(one_m)
    else:
        mod = one_m ** gamma
    return bce * (alpha_factor * mod)


def _focal_kernel(pred_ref, true_ref, out_ref, *, gamma, alpha, tm, steps,
                  rows, full_blocks, needs_mask):
    c = pl.program_id(0)          # core / parallel axis
    s = pl.program_id(1)          # streaming / reduction axis

    @pl.when(s == 0)
    def _():
        out_ref[...] = jnp.zeros_like(out_ref)

    x = pred_ref[...].astype(jnp.float32)
    y = true_ref[...].astype(jnp.float32)
    loss = _focal_terms(x, y, gamma, alpha, in_kernel=True)

    def fold(v):
        # (tm,128) -> (8,128): elementwise vreg adds on the VPU; only one vreg
        # is read-modify-written in the resident output block per step.
        return v.reshape(tm // SUB, SUB, LANE).sum(axis=0)

    if needs_mask:
        blk = c * steps + s                     # logical flat block index

        @pl.when(blk < full_blocks)
        def _():                                # fully valid block: no mask work
            out_ref[0] += fold(loss)

        @pl.when(blk >= full_blocks)
        def _():                                # partial / over-covered block
            rid = lax.broadcasted_iota(jnp.int32, (tm, LANE), 0)
            row_ok = (blk * tm + rid) < rows    # row-index mask: no i32 overflow
            out_ref[0] += fold(jnp.where(row_ok, loss, 0.0))
    else:
        out_ref[0] += fold(loss)


def _default_num_cores():
    # v7x has 2 TensorCores per chip; v5e/v6e have 1 (a 2-way split there only
    # adds overhead).  Best-effort detection; fall back to 1.
    try:
        kind = jax.devices()[0].device_kind.lower()
    except Exception:
        return 1
    return 2 if ("v7" in kind or "7x" in kind) else 1


def focal_loss(pred, true, gamma=1.5, alpha=0.25, *, num_cores=None,
               max_tm=4096, vmem_limit_bytes=32 * 1024 * 1024):
    """FocalLoss(BCEWithLogitsLoss(reduction='mean'), gamma, alpha).forward."""
    assert pred.shape == true.shape
    n = int(pred.size)
    assert n > 0
    gamma = float(gamma)
    alpha = float(alpha)
    if num_cores is None:
        num_cores = _default_num_cores()

    # NOTE: ravel is free for contiguous inputs; a transposed/non-contiguous
    # input silently materializes one copy here.
    pred_f = jnp.ravel(pred)
    true_f = jnp.ravel(true)

    rows = n // LANE                 # full 128-lane rows handled by the kernel
    rem = n - rows * LANE            # < 128 trailing elements -> plain jnp

    if rows < SUB:
        # Too small for an (8,128) tile: compute everything with plain jnp.
        loss = _focal_terms(pred_f.astype(jnp.float32),
                            true_f.astype(jnp.float32),
                            gamma, alpha, in_kernel=False)
        return jnp.sum(loss) / jnp.float32(n)

    tail_sum = jnp.float32(0.0)
    if rem:
        # NOTE: for non-lane-aligned n XLA materializes a copy of the main slab
        # here (unavoidable without a 1-D-ref kernel); no full jnp.pad though,
        # and the <128-element remainder is folded in with plain jnp.
        main_p = pred_f[: rows * LANE]
        main_t = true_f[: rows * LANE]
        tail_p = pred_f[rows * LANE:].astype(jnp.float32)
        tail_t = true_f[rows * LANE:].astype(jnp.float32)
        tail_sum = jnp.sum(_focal_terms(tail_p, tail_t, gamma, alpha,
                                        in_kernel=False))
    else:
        main_p, main_t = pred_f, true_f         # zero-copy path

    pred2d = main_p.reshape(rows, LANE)          # free reshape of flat array
    true2d = main_t.reshape(rows, LANE)

    # Row-tile: multiple of 32 when possible (covers bf16/int8 sublane tiling),
    # multiple of 8 otherwise, capped by max_tm and by the row count.
    max_tm = max(SUB, (int(max_tm) // SUB) * SUB)
    tm_unit = 32 if rows >= 32 else SUB
    tm = max(SUB, min(max_tm, (rows // tm_unit) * tm_unit))

    nblocks = pl.cdiv(rows, tm)                  # real data blocks
    steps = pl.cdiv(nblocks, num_cores)          # per-core streaming steps
    full_blocks = rows // tm                     # blocks with no overhang
    needs_mask = (rows % tm != 0) or (num_cores * steps > nblocks)

    kernel = functools.partial(
        _focal_kernel, gamma=gamma, alpha=alpha, tm=tm, steps=steps,
        rows=rows, full_blocks=full_blocks, needs_mask=needs_mask)

    def in_map(c, s):
        # Clamp so over-covering grid points (zeroed in-kernel by the row mask)
        # never index past the array.
        return (jnp.minimum(c * steps + s, nblocks - 1), 0)

    partials = pl.pallas_call(
        kernel,
        out_shape=jax.ShapeDtypeStruct((num_cores, SUB, LANE), jnp.float32),
        grid_spec=pltpu.PrefetchScalarGridSpec(
            num_scalar_prefetch=0,
            grid=(num_cores, steps),
            in_specs=[
                pl.BlockSpec((tm, LANE), in_map),
                pl.BlockSpec((tm, LANE), in_map),
            ],
            # Output block is resident across the 'arbitrary' axis -> direct
            # (8,128) accumulation, no scratch needed.
            out_specs=pl.BlockSpec((1, SUB, LANE), lambda c, s: (c, 0, 0)),
        ),
        compiler_params=pltpu.CompilerParams(
            dimension_semantics=("parallel", "arbitrary"),
            vmem_limit_bytes=int(vmem_limit_bytes)),
    )(pred2d, true2d)

    # reduction == 'mean': sum of per-core partial sums (+ jnp tail) / count.
    return (jnp.sum(partials) + tail_sum) / jnp.float32(n)


def _reference_focal_loss(pred, true, gamma=1.5, alpha=0.25):
    x = pred.astype(jnp.float32)
    y = true.astype(jnp.float32)
    bce = jnp.maximum(x, 0.0) - x * y + jnp.log1p(jnp.exp(-jnp.abs(x)))
    p = jax.nn.sigmoid(x)
    p_t = y * p + (1 - y) * (1 - p)
    af = y * alpha + (1 - y) * (1 - alpha)
    mf = (1.0 - p_t) ** gamma
    return jnp.mean(bce * af * mf)


if __name__ == "__main__":
    key = jax.random.PRNGKey(0)
    k1, k2, k3, k4 = jax.random.split(key, 4)

    # NCHW-shaped logits / targets, like a YOLO objectness/cls head output.
    pred = jax.random.normal(k1, (2, 4, 16, 16), dtype=jnp.float32) * 2.0
    true = (jax.random.uniform(k2, (2, 4, 16, 16)) > 0.7).astype(jnp.float32)

    out = focal_loss(pred, true, gamma=1.5, alpha=0.25)
    out = jax.block_until_ready(out)
    ref = _reference_focal_loss(pred, true)
    assert jnp.allclose(out, ref, rtol=1e-4, atol=1e-6), (out, ref)

    # Non-lane-aligned size + soft (non-binary) targets: exercises the in-kernel
    # overhang mask, the jnp tail remainder, and the general-y algebra.
    pred2 = jax.random.normal(k3, (3, 5, 7, 11), dtype=jnp.float32)
    true2 = jax.random.uniform(k4, (3, 5, 7, 11), dtype=jnp.float32)

    out2 = focal_loss(pred2, true2, gamma=1.5, alpha=0.25)
    out2 = jax.block_until_ready(out2)
    ref2 = _reference_focal_loss(pred2, true2)
    assert jnp.allclose(out2, ref2, rtol=1e-4, atol=1e-6), (out2, ref2)

    print("KERNEL_OK")
</pallas_src>

<mosaic_0001>
module attributes {stable_mosaic.version = 11 : i64} {
  func.func @_focal_kernel(%arg0: i32, %arg1: i32, %arg2: memref<16x128xf32, #tpu.memory_space<vmem>>, %arg3: memref<16x128xf32, #tpu.memory_space<vmem>>, %arg4: memref<1x8x128xf32, #tpu.memory_space<vmem>>) attributes {dimension_semantics = [#tpu.dimension_semantics<parallel>, #tpu.dimension_semantics<arbitrary>], iteration_bounds = array<i64: 1, 1>, scalar_prefetch = 0 : i64, scratch_operands = 0 : i64, tpu.core_type = #tpu.core_type<tc>, window_params = [{transform_indices = @transform_0, window_bounds = array<i64: 16, 128>}, {transform_indices = @transform_1, window_bounds = array<i64: 16, 128>}, {transform_indices = @transform_2, window_bounds = array<i64: 1, 8, 128>}]} {
    %c0_i32 = arith.constant 0 : i32
    %0 = arith.cmpi eq, %arg1, %c0_i32 : i32
    %1 = arith.extui %0 : i1 to i32
    %c0_i32_0 = arith.constant 0 : i32
    %2 = arith.cmpi ne, %1, %c0_i32_0 : i32
    scf.if %2 {
      %cst_20 = arith.constant 0.000000e+00 : f32
      %49 = vector.broadcast %cst_20 : f32 to vector<1x8x128xf32>
      %c0_21 = arith.constant 0 : index
      %c0_22 = arith.constant 0 : index
      %c0_23 = arith.constant 0 : index
      %50 = vector.load %arg4[%c0_21, %c0_22, %c0_23] : memref<1x8x128xf32, #tpu.memory_space<vmem>>, vector<1x8x128xf32>
      tpu.vector_store %arg4[%c0_21, %c0_22, %c0_23], %49 {strides = array<i32>} : memref<1x8x128xf32, #tpu.memory_space<vmem>>, vector<1x8x128xf32>,
    } else {
    }
    %c0 = arith.constant 0 : index
    %c0_1 = arith.constant 0 : index
    %3 = vector.load %arg2[%c0, %c0_1] : memref<16x128xf32, #tpu.memory_space<vmem>>, vector<16x128xf32>
    %c0_2 = arith.constant 0 : index
    %c0_3 = arith.constant 0 : index
    %4 = vector.load %arg3[%c0_2, %c0_3] : memref<16x128xf32, #tpu.memory_space<vmem>>, vector<16x128xf32>
    %5 = math.absf %3 : vector<16x128xf32>
    %cst = arith.constant 0.000000e+00 : f32
    %6 = vector.broadcast %cst : f32 to vector<16x128xf32>
    %7 = arith.subf %6, %5 : vector<16x128xf32>
    %8 = math.exp %7 : vector<16x128xf32>
    %cst_4 = arith.constant 0.000000e+00 : f32
    %9 = vector.broadcast %cst_4 : f32 to vector<16x128xf32>
    %10 = arith.maximumf %3, %9 : vector<16x128xf32>
    %11 = arith.mulf %3, %4 : vector<16x128xf32>
    %12 = arith.subf %10, %11 : vector<16x128xf32>
    %13 = math.log1p %8 : vector<16x128xf32>
    %14 = arith.addf %12, %13 : vector<16x128xf32>
    %cst_5 = arith.constant 1.000000e+00 : f32
    %15 = vector.broadcast %cst_5 : f32 to vector<16x128xf32>
    %16 = arith.addf %15, %8 : vector<16x128xf32>
    %17 = tpu.reciprocal %16 {approx = true} : vector<16x128xf32> -> vector<16x128xf32>
    %18 = arith.mulf %16, %17 : vector<16x128xf32>
    %cst_6 = arith.constant 2.000000e+00 : f32
    %19 = vector.broadcast %cst_6 : f32 to vector<16x128xf32>
    %20 = arith.subf %19, %18 : vector<16x128xf32>
    %21 = arith.mulf %17, %20 : vector<16x128xf32>
    %cst_7 = arith.constant 0.000000e+00 : f32
    %22 = vector.broadcast %cst_7 : f32 to vector<16x128xf32>
    %23 = arith.cmpf oge, %3, %22 : vector<16x128xf32>
    %cst_8 = arith.constant 1.000000e+00 : f32
    %24 = vector.broadcast %cst_8 : f32 to vector<16x128xf32>
    %25 = arith.select %23, %24, %8 : vector<16x128xi1>, vector<16x128xf32>
    %26 = arith.mulf %25, %21 : vector<16x128xf32>
    %cst_9 = arith.constant 2.000000e+00 : f32
    %27 = vector.broadcast %cst_9 : f32 to vector<16x128xf32>
    %28 = arith.mulf %27, %4 : vector<16x128xf32>
    %cst_10 = arith.constant 1.000000e+00 : f32
    %29 = vector.broadcast %cst_10 : f32 to vector<16x128xf32>
    %30 = arith.subf %29, %28 : vector<16x128xf32>
    %31 = arith.mulf %26, %30 : vector<16x128xf32>
    %32 = arith.addf %4, %31 : vector<16x128xf32>
    %cst_11 = arith.constant -5.000000e-01 : f32
    %33 = vector.broadcast %cst_11 : f32 to vector<16x128xf32>
    %34 = arith.mulf %4, %33 : vector<16x128xf32>
    %cst_12 = arith.constant 7.500000e-01 : f32
    %35 = vector.broadcast %cst_12 : f32 to vector<16x128xf32>
    %36 = arith.addf %35, %34 : vector<16x128xf32>
    %37 = math.sqrt %32 : vector<16x128xf32>
    %38 = arith.mulf %32, %37 : vector<16x128xf32>
    %39 = arith.mulf %36, %38 : vector<16x128xf32>
    %40 = arith.mulf %14, %39 : vector<16x128xf32>
    %c0_13 = arith.constant 0 : index
    %c0_14 = arith.constant 0 : index
    %c0_15 = arith.constant 0 : index
    %41 = vector.load %arg4[%c0_13, %c0_14, %c0_15] : memref<1x8x128xf32, #tpu.memory_space<vmem>>, vector<1x8x128xf32>
    %42 = vector.shape_cast %41 : vector<1x8x128xf32> to vector<8x128xf32>
    %43 = vector.shape_cast %40 : vector<16x128xf32> to vector<2x8x128xf32>
    %cst_16 = arith.constant dense<0.000000e+00> : vector<8x128xf32>
    %44 = vector.multi_reduction <add>, %43, %cst_16 [0] : vector<2x8x128xf32> to vector<8x128xf32>
    %45 = arith.addf %42, %44 : vector<8x128xf32>
    %c0_17 = arith.constant 0 : index
    %c0_18 = arith.constant 0 : index
    %c0_19 = arith.constant 0 : index
    %46 = vector.load %arg4[%c0_17, %c0_18, %c0_19] : memref<1x8x128xf32, #tpu.memory_space<vmem>>, vector<1x8x128xf32>
    %47 = vector.shape_cast %46 : vector<1x8x128xf32> to vector<8x128xf32>
    %48 = vector.shape_cast %45 : vector<8x128xf32> to vector<1x8x128xf32>
    tpu.vector_store %arg4[%c0_17, %c0_18, %c0_19], %48 {strides = array<i32>} : memref<1x8x128xf32, #tpu.memory_space<vmem>>, vector<1x8x128xf32>,
    return
  }
  func.func @transform_0(%arg0: i32, %arg1: i32) -> (i32, i32) {
    %c1_i32 = arith.constant 1 : i32
    %0 = arith.muli %arg0, %c1_i32 : i32
    %1 = arith.addi %0, %arg1 : i32
    %c0_i32 = arith.constant 0 : i32
    %2 = arith.minsi %1, %c0_i32 : i32
    %c0_i32_0 = arith.constant 0 : i32
    %c0_i32_1 = arith.constant 0 : i32
    return %2, %c0_i32_0 : i32, i32
  }
  func.func @transform_1(%arg0: i32, %arg1: i32) -> (i32, i32) {
    %c1_i32 = arith.constant 1 : i32
    %0 = arith.muli %arg0, %c1_i32 : i32
    %1 = arith.addi %0, %arg1 : i32
    %c0_i32 = arith.constant 0 : i32
    %2 = arith.minsi %1, %c0_i32 : i32
    %c0_i32_0 = arith.constant 0 : i32
    %c0_i32_1 = arith.constant 0 : i32
    return %2, %c0_i32_0 : i32, i32
  }
  func.func @transform_2(%arg0: i32, %arg1: i32) -> (i32, i32, i32) {
    %c0_i32 = arith.constant 0 : i32
    %c0_i32_0 = arith.constant 0 : i32
    %c0_i32_1 = arith.constant 0 : i32
    return %arg0, %c0_i32, %c0_i32_0 : i32, i32, i32
  }
}

</mosaic_0001>

<llo_original>
// kernel: tpu_custom_call.1
$region0: #{tpu_custom_call.1}
  #allocation0 [shape = 'u32[]', space=smem, size = 0x4, offset = 0x4, fixed_abs, tag = 'smem constant byte address 0x4 - core index']
  #allocation1 [shape = 'u32[144,128]{1,0:T(1,128)}', space=vmem, size = 0x12000, scoped, tag = 'internal scratch']
  %s0 = inlined_call_operand.hbm [shape: f32[16,128], index: 0, kind: input, shape index: {}]
  %s1 = inlined_call_operand.hbm [shape: f32[16,128], index: 1, kind: input, shape index: {}]
  %s2 = inlined_call_operand.hbm [shape: f32[1,8,128], index: 2, kind: output, shape index: {}]
  %s3 = sld [smem:[#allocation0]]
  $region30: #{tpu_custom_call.1} parent=0
    _
  %s5 = ssub.s32 1, %s3
  %s6 = scalar_select 0, %s5, %s3
  $region1: #{tpu_custom_call.1} parent=0
    #allocation2 [shape = 'u8[8192]{0}', space=vmem, size = 0x2000, scoped, tag = 'input window, operand 0, single buffered']
    #allocation3 [shape = 's32[1]{0}', space=sflag, size = 0x4, scoped, tag = 'scoped memory for tpu_custom_call.1']
    #allocation4 [shape = 's32[1]{0}', space=sflag, size = 0x4, scoped, tag = 'scoped memory for tpu_custom_call.1']
    #allocation5 [shape = 'u8[8192]{0}', space=vmem, size = 0x2000, scoped, tag = 'input window, operand 1, single buffered']
    #allocation6 [shape = 's32[1]{0}', space=sflag, size = 0x4, scoped, tag = 'scoped memory for tpu_custom_call.1']
    #allocation7 [shape = 'u8[4096]{0}', space=vmem, size = 0x1000, scoped, tag = 'output window, operand 0, single buffered']
    %7 = vsyncpa [#allocation3], 0
    %8 = vsyncpa [#allocation6], 0
    %9 = vsyncpa [#allocation4], 0
    // Predicated region
    $region2: #{tpu_custom_call.1} parent=1 // pred_check
      _
    $region3: #{tpu_custom_call.1} parent=1 // pred_check_branch
      %11 = sbr.rel (0) target = $region5
    $region4: #{tpu_custom_call.1} parent=1 // pred_region
      %s12 = sadd.s32 0, 0
      %p13 = scmp.lt.s32.totalorder %s12, 0
      %s14 = scalar_select %p13, %s12, 0
      %s15 = smul.u32 2, %s14
      %s17 = ssub.s32 256, 256
      %18 = vsyncadd [#allocation3], %s17
      %s19 = smul.addr %s15, 128
      %s20 = scalar_lea.hbm %s0, %s19
      %s21 = sshll.u32 [#allocation2], 4
      %s22 = int_to_ptr.vmem [resolvable:$true] %s21
      %27 = dma.hbm_to_vmem [thread:$0]  %s20, 256, %s22, [#allocation3], 128, 128, 8
    $region5: #{tpu_custom_call.1} parent=1 // pred_fallthru
      _
    // Predicated region
    $region6: #{tpu_custom_call.1} parent=1 // pred_check
      _
    $region7: #{tpu_custom_call.1} parent=1 // pred_check_branch
      %29 = sbr.rel (0) target = $region9
    $region8: #{tpu_custom_call.1} parent=1 // pred_region
      %s30 = sadd.s32 0, 0
      %p31 = scmp.lt.s32.totalorder %s30, 0
      %s32 = scalar_select %p31, %s30, 0
      %s33 = smul.u32 2, %s32
      %s35 = ssub.s32 256, 256
      %36 = vsyncadd [#allocation6], %s35
      %s37 = smul.addr %s33, 128
      %s38 = scalar_lea.hbm %s1, %s37
      %s39 = sshll.u32 [#allocation5], 4
      %s40 = int_to_ptr.vmem [resolvable:$true] %s39
      %45 = dma.hbm_to_vmem [thread:$0]  %s38, 256, %s40, [#allocation6], 128, 128, 8
    $region9: #{tpu_custom_call.1} parent=1 // pred_fallthru
      _
    // Predicated region
    $region10: #{tpu_custom_call.1} parent=1 // pred_check
      _
    $region11: #{tpu_custom_call.1} parent=1 // pred_check_branch
      %47 = sbr.rel (0) target = $region13
    $region12: #{tpu_custom_call.1} parent=1 // pred_region
      %48 = dma.done [#allocation3], 256
    $region13: #{tpu_custom_call.1} parent=1 // pred_fallthru
      _
    // Predicated region
    $region14: #{tpu_custom_call.1} parent=1 // pred_check
      _
    $region15: #{tpu_custom_call.1} parent=1 // pred_check_branch
      %50 = sbr.rel (0) target = $region17
    $region16: #{tpu_custom_call.1} parent=1 // pred_region
      %51 = dma.done [#allocation6], 256
    $region17: #{tpu_custom_call.1} parent=1 // pred_fallthru
      _
    %s52 = sadd.s32 0, 0
    %p53 = scmp.lt.s32.totalorder %s52, 0
    %s54 = scalar_select %p53, %s52, 0
    %s55 = smul.u32 2, %s54
    %s56 = sadd.s32 0, 0
    %p57 = scmp.lt.s32.totalorder %s56, 0
    %s58 = scalar_select %p57, %s56, 0
    %s59 = smul.u32 2, %s58
    %p60 = scmp.eq.s32.totalorder 0, 0
    // Predicated region
    $region18: #{tpu_custom_call.1} parent=1 // pred_check
      %p61 = pneg %p60
    $region19: #{tpu_custom_call.1} parent=1 // pred_check_branch
      %63 = sbr.rel (%p61) target = $region21
    $region20: #{tpu_custom_call.1} parent=1 // pred_region
      %64 = vst [vmem:[#allocation7] sm:$0xff] 0.0
    $region21: #{tpu_custom_call.1} parent=1 // pred_fallthru
      _
    %v65 = vld [vmem:[#allocation2] sm:$0xff]
    %v66 = vld [vmem:[#allocation2 + $0x8] sm:$0xff]
    %v67 = vld [vmem:[#allocation5] sm:$0xff]
    %v68 = vld [vmem:[#allocation5 + $0x8] sm:$0xff]
    %v69 = vand.u32 2147483647, %v65
    %v70 = vand.u32 2147483647, %v66
    %v71 = vsub.f32 0.0, %v69
    %v72 = vsub.f32 0.0, %v70
    %v73 = vmul.f32 %v71, 1.442695
    %v74 = vpow.pop %v73
    %v75 = vmul.f32 %v72, 1.442695
    %v76 = vpow.pop %v75
    %v77 = vmax.f32 %v65, 0.0
    %v78 = vmax.f32 %v66, 0.0
    %v79 = vmul.f32 %v65, %v67
    %v80 = vmul.f32 %v66, %v68
    %v81 = vsub.f32 %v77, %v79
    %v82 = vsub.f32 %v78, %v80
    %v83 = vadd.f32 %v74, 1.0
    %v84 = vlog2.pop %v83
    %v85 = vmul.f32 %v84, 0.6931472
    %v86 = vmul.f32 -0.5, %v74
    %v87 = vadd.f32 %v86, 1.0
    %v88 = vmul.f32 %v87, %v74
    %v89 = vand.u32 2147483647, %v74
    %vm90 = vcmp.lt.f32.partialorder %v89, 0.0004427343
    %v91 = vsel %vm90, %v88, %v85
    %v92 = vadd.f32 %v76, 1.0
    %v93 = vlog2.pop %v92
    %v94 = vmul.f32 %v93, 0.6931472
    %v95 = vmul.f32 -0.5, %v76
    %v96 = vadd.f32 %v95, 1.0
    %v97 = vmul.f32 %v96, %v76
    %v98 = vand.u32 2147483647, %v76
    %vm99 = vcmp.lt.f32.partialorder %v98, 0.0004427343
    %v100 = vsel %vm99, %v97, %v94
    %v101 = vadd.f32 %v81, %v91
    %v102 = vadd.f32 %v82, %v100
    %v103 = vadd.f32 %v74, 1.0
    %v104 = vadd.f32 %v76, 1.0
    %v105 = vrcp.pop %v103
    %v106 = vrcp.pop %v104
    %v107 = vmul.f32 %v103, %v105
    %v108 = vmul.f32 %v104, %v106
    %v109 = vsub.f32 2.0, %v107
    %v110 = vsub.f32 2.0, %v108
    %v111 = vmul.f32 %v105, %v109
    %v112 = vmul.f32 %v106, %v110
    %vm113 = vcmp.ge.f32.partialorder %v65, 0.0
    %vm114 = vcmp.ge.f32.partialorder %v66, 0.0
    %v115 = vsel %vm113, 1.0, %v74
    %v116 = vsel %vm114, 1.0, %v76
    %v117 = vmul.f32 %v115, %v111
    %v118 = vmul.f32 %v116, %v112
    %v119 = vmul.f32 %v67, 2.0
    %v120 = vmul.f32 %v68, 2.0
    %v121 = vsub.f32 1.0, %v119
    %v122 = vsub.f32 1.0, %v120
    %v123 = vmul.f32 %v117, %v121
    %v124 = vmul.f32 %v118, %v122
    %v125 = vadd.f32 %v67, %v123
    %v126 = vadd.f32 %v68, %v124
    %v127 = vmul.f32 %v67, -0.5
    %v128 = vmul.f32 %v68, -0.5
    %v129 = vadd.f32 %v127, 0.75
    %v130 = vadd.f32 %v128, 0.75
    %v131 = vrsqrt.pop %v125
    %v132 = vmul.f32 %v125, %v131
    %vm133 = vcmp.eq.f32.partialorder %v125, inf
    %v134 = vsel %vm133, %v125, %v132
    %vm135 = vcmp.eq.f32.partialorder %v125, 0.0
    %v136 = vand.u32 %v125, 2147483648
    %v137 = vsel %vm135, %v136, %v134
    %v138 = vrsqrt.pop %v126
    %v139 = vmul.f32 %v126, %v138
    %vm140 = vcmp.eq.f32.partialorder %v126, inf
    %v141 = vsel %vm140, %v126, %v139
    %vm142 = vcmp.eq.f32.partialorder %v126, 0.0
    %v143 = vand.u32 %v126, 2147483648
    %v144 = vsel %vm142, %v143, %v141
    %v145 = vmul.f32 %v125, %v137
    %v146 = vmul.f32 %v126, %v144
    %v147 = vmul.f32 %v129, %v145
    %v148 = vmul.f32 %v130, %v146
    %v149 = vmul.f32 %v101, %v147
    %v150 = vmul.f32 %v102, %v148
    %v151 = vld [vmem:[#allocation7] sm:$0xff]
    %v152 = vadd.f32 %v149, %v150
    %v153 = vadd.f32 %v151, %v152
    %154 = vst [vmem:[#allocation7] sm:$0xff] %v153
    // Predicated region
    $region22: #{tpu_custom_call.1} parent=1 // pred_check
      _
    $region23: #{tpu_custom_call.1} parent=1 // pred_check_branch
      %156 = sbr.rel (0) target = $region25
    $region24: #{tpu_custom_call.1} parent=1 // pred_region
      %s158 = ssub.s32 128, 128
      %159 = vsyncadd [#allocation4], %s158
      %s161 = sshll.u32 [#allocation7], 4
      %s162 = int_to_ptr.vmem [resolvable:$true] %s161
      %164 = dma.vmem_to_hbm [thread:$0]  %s162, 128, %s2, [#allocation4]
    $region25: #{tpu_custom_call.1} parent=1 // pred_fallthru
      _
    // Predicated region
    $region26: #{tpu_custom_call.1} parent=1 // pred_check
      _
    $region27: #{tpu_custom_call.1} parent=1 // pred_check_branch
      %166 = sbr.rel (0) target = $region29
    $region28: #{tpu_custom_call.1} parent=1 // pred_region
      %167 = dma.done [#allocation4], 128
    $region29: #{tpu_custom_call.1} parent=1 // pred_fallthru
      _
    %168 = vsyncpa [#allocation3], 1
    %169 = vsyncpa [#allocation6], 1
    %170 = vsyncpa [#allocation4], 1

</llo_original>
